<compile_context>
chip_gen: v5e
topology: v5e:2x2
jax: 0.10.0
libtpu: 0.0.40
codegen_flags: <defaults>
</compile_context>

<pallas_src>
import functools

import jax
import jax.numpy as jnp
from jax import lax
from jax.experimental import pallas as pl
from jax.experimental.pallas import tpu as pltpu


def _cdiv(a, b):
    return -(-a // b)


def _round_up(a, b):
    return _cdiv(a, b) * b


def _ipow(base, g):
    """base ** g for a static non-negative integer g, via VPU multiplies."""
    g = int(g)
    if g == 0:
        return jnp.ones_like(base)          # torch.pow(x, 0) == 1 (incl. x==0)
    result = None
    cur = base
    while g:
        if g & 1:
            result = cur if result is None else result * cur
        g >>= 1
        if g:
            cur = cur * cur
    return result


def _asl_kernel(x_ref, y_ref, out_ref, acc_ref, *,
                gamma_neg, gamma_pos, clip, eps,
                rows, cols, row_tile, tiles_per_core,
                needs_mask, binary_fast):
    p = pl.program_id(0)      # parallel slice (TensorCore split on v7x)
    i = pl.program_id(1)      # reduction step over row tiles

    @pl.when(i == 0)
    def _():
        acc_ref[...] = jnp.zeros_like(acc_ref)

    x = x_ref[...].astype(jnp.float32)
    y = y_ref[...].astype(jnp.float32)

    # sigmoid: one EUP exp + reciprocal
    xs_pos = pl.reciprocal(1.0 + jnp.exp(-x))
    xs_neg = 1.0 - xs_pos

    # asymmetric clipping (probability shifting), clamp(max=1)
    if clip is not None and clip > 0:
        xs_neg = jnp.minimum(xs_neg + clip, 1.0)

    if binary_fast:
        # y is a {0,1} multi-label mask and both gammas are static ints:
        # fuse the two BCE logs into one log and replace pow() with integer
        # VPU multiplies (no transcendental for the focal weight).
        y_pos = y > 0.5
        p_sel = jnp.where(y_pos, xs_pos, xs_neg)
        loss = jnp.log(jnp.maximum(p_sel, eps))
        if gamma_neg > 0 or gamma_pos > 0:
            base = 1.0 - p_sel
            loss = loss * jnp.where(y_pos,
                                    _ipow(base, gamma_pos),
                                    _ipow(base, gamma_neg))
    else:
        # general path (soft labels / non-integer gammas)
        los_pos = y * jnp.log(jnp.maximum(xs_pos, eps))
        los_neg = (1.0 - y) * jnp.log(jnp.maximum(xs_neg, eps))
        loss = los_pos + los_neg
        if gamma_neg > 0 or gamma_pos > 0:
            pt = xs_pos * y + xs_neg * (1.0 - y)
            gam = gamma_pos * y + gamma_neg * (1.0 - y)
            base = 1.0 - pt
            # torch.pow semantics: pow(0, g>0) == 0, pow(0, 0) == 1
            w = jnp.where(base > 0.0,
                          jnp.exp(gam * jnp.log(jnp.maximum(base, 1e-30))),
                          jnp.where(gam == 0.0, 1.0, 0.0))
            loss = loss * w

    if needs_mask:
        row0 = (p * tiles_per_core + i) * row_tile
        r = lax.broadcasted_iota(jnp.int32, loss.shape, 0) + row0
        c = lax.broadcasted_iota(jnp.int32, loss.shape, 1)
        loss = jnp.where((r < rows) & (c < cols), loss, 0.0)

    # lane-parallel partial sums; only a small cross-sublane reduce per step
    acc_ref[...] += jnp.sum(loss, axis=0, keepdims=True)

    @pl.when(i == pl.num_programs(1) - 1)
    def _():
        total = jnp.sum(acc_ref[...])
        # lane-dense unmasked store; wrapper reads element [0] of each slice
        out_ref[...] = jnp.full(out_ref.shape, total, dtype=out_ref.dtype)


def asymmetric_loss(x, y, *, gamma_neg=4, gamma_pos=1, clip=0.05, eps=1e-8,
                    assume_binary_targets=True,
                    row_tile=None, max_row_tile=1024,
                    target_tile_bytes=4 * 1024 * 1024):
    """Computes -sum(ASL(x, y)) exactly like AsymmetricLoss.forward.

    x: (N, C) logits (f32 or bf16; upcast to f32 in-kernel).
    y: (N, C) targets; may be f32 / bf16 / int8 / bool 0-1 mask (saves HBM BW).
    """
    assert x.shape == y.shape and x.ndim == 2
    N, C = x.shape
    C_pad = _round_up(C, 128)                     # lane-dense last dim

    x_item = jnp.dtype(x.dtype).itemsize
    y_item = jnp.dtype(y.dtype).itemsize

    if row_tile is None:
        rt = target_tile_bytes // (C_pad * max(x_item, y_item))
        rt = min(max_row_tile, max(8, (rt // 8) * 8))
        rt = min(rt, _round_up(N, 8))             # don't exceed needed rows
        row_tile = max(8, rt)
    assert row_tile % 8 == 0

    n_tiles = _cdiv(N, row_tile)
    num_parallel = 2 if n_tiles >= 2 else 1       # both TensorCores on v7x
    tiles_per_core = _cdiv(n_tiles, num_parallel)
    N_pad = tiles_per_core * num_parallel * row_tile

    needs_mask = (N_pad != N) or (C_pad != C)
    if needs_mask:
        x = jnp.pad(x, ((0, N_pad - N), (0, C_pad - C)))
        y = jnp.pad(y, ((0, N_pad - N), (0, C_pad - C)))

    binary_fast = (assume_binary_targets
                   and float(gamma_neg).is_integer()
                   and float(gamma_pos).is_integer()
                   and gamma_neg >= 0 and gamma_pos >= 0)

    kernel = functools.partial(
        _asl_kernel,
        gamma_neg=gamma_neg, gamma_pos=gamma_pos, clip=clip, eps=eps,
        rows=N, cols=C, row_tile=row_tile, tiles_per_core=tiles_per_core,
        needs_mask=needs_mask, binary_fast=binary_fast,
    )

    # double-buffered inputs + small scratch/out; keep well under v7x VMEM
    in_tile_bytes = row_tile * C_pad * (x_item + y_item)
    vmem_limit = int(min(64 * 2**20,
                         max(32 * 2**20, 2 * in_tile_bytes + (4 << 20))))

    out = pl.pallas_call(
        kernel,
        out_shape=jax.ShapeDtypeStruct((num_parallel * 8, 128), jnp.float32),
        grid_spec=pltpu.PrefetchScalarGridSpec(
            num_scalar_prefetch=0,
            grid=(num_parallel, tiles_per_core),
            in_specs=[
                pl.BlockSpec((row_tile, C_pad),
                             lambda p, i, t=tiles_per_core: (p * t + i, 0)),
                pl.BlockSpec((row_tile, C_pad),
                             lambda p, i, t=tiles_per_core: (p * t + i, 0)),
            ],
            out_specs=pl.BlockSpec((8, 128), lambda p, i: (p, 0)),
            scratch_shapes=[pltpu.VMEM((1, C_pad), jnp.float32)],
        ),
        compiler_params=pltpu.CompilerParams(
            dimension_semantics=("parallel", "arbitrary"),
            vmem_limit_bytes=vmem_limit,
        ),
    )(x, y)

    # each parallel slice wrote its partial sum broadcast over an (8,128) block
    partials = out[::8, 0]
    return -jnp.sum(partials)


def _reference(x, y, gamma_neg=4, gamma_pos=1, clip=0.05, eps=1e-8):
    # pure-JAX reference mirroring the PyTorch forward
    xs_pos = jax.nn.sigmoid(x)
    xs_neg = 1.0 - xs_pos
    xs_neg = jnp.minimum(xs_neg + clip, 1.0)
    los_pos = y * jnp.log(jnp.maximum(xs_pos, eps))
    los_neg = (1.0 - y) * jnp.log(jnp.maximum(xs_neg, eps))
    loss = los_pos + los_neg
    pt = xs_pos * y + xs_neg * (1.0 - y)
    gamma = gamma_pos * y + gamma_neg * (1.0 - y)
    w = jnp.power(1.0 - pt, gamma)
    return -(loss * w).sum()


if __name__ == "__main__":
    key = jax.random.PRNGKey(0)
    kx, ky = jax.random.split(key)
    # multi-label setting: batch x num_classes, deliberately ragged
    # (N not a multiple of 8, C not a multiple of 128) to exercise pad+mask.
    N, C = 10, 80
    x = jax.random.normal(kx, (N, C), dtype=jnp.float32) * 2.0
    y_f32 = (jax.random.uniform(ky, (N, C)) > 0.7).astype(jnp.float32)
    y_i8 = y_f32.astype(jnp.int8)   # 0/1 mask: 1 byte/elem on the HBM wire

    out = asymmetric_loss(x, y_i8)
    jax.block_until_ready(out)

    ref = _reference(x, y_f32)
    assert jnp.allclose(out, ref, rtol=1e-5, atol=1e-4), (out, ref)
    print("KERNEL_OK")
</pallas_src>

<mosaic_0001>
module attributes {stable_mosaic.version = 11 : i64} {
  func.func @_asl_kernel(%arg0: i32, %arg1: i32, %arg2: memref<16x128xf32, #tpu.memory_space<vmem>>, %arg3: memref<16x128xi8, #tpu.memory_space<vmem>>, %arg4: memref<8x128xf32, #tpu.memory_space<vmem>>, %arg5: memref<1x128xf32, #tpu.memory_space<vmem>>) attributes {dimension_semantics = [#tpu.dimension_semantics<parallel>, #tpu.dimension_semantics<arbitrary>], iteration_bounds = array<i64: 1, 1>, scalar_prefetch = 0 : i64, scratch_operands = 1 : i64, tpu.core_type = #tpu.core_type<tc>, window_params = [{transform_indices = @transform_0, window_bounds = array<i64: 16, 128>}, {transform_indices = @transform_1, window_bounds = array<i64: 16, 128>}, {transform_indices = @transform_2, window_bounds = array<i64: 8, 128>}]} {
    %c0_i32 = arith.constant 0 : i32
    %0 = arith.cmpi eq, %arg1, %c0_i32 : i32
    %1 = arith.extui %0 : i1 to i32
    %c0_i32_0 = arith.constant 0 : i32
    %2 = arith.cmpi ne, %1, %c0_i32_0 : i32
    scf.if %2 {
      %cst_19 = arith.constant 0.000000e+00 : f32
      %52 = vector.broadcast %cst_19 : f32 to vector<1x128xf32>
      %c0_20 = arith.constant 0 : index
      %c0_21 = arith.constant 0 : index
      %53 = vector.load %arg5[%c0_20, %c0_21] : memref<1x128xf32, #tpu.memory_space<vmem>>, vector<1x128xf32>
      tpu.vector_store %arg5[%c0_20, %c0_21], %52 {strides = array<i32>} : memref<1x128xf32, #tpu.memory_space<vmem>>, vector<1x128xf32>,
    } else {
    }
    %c0 = arith.constant 0 : index
    %c0_1 = arith.constant 0 : index
    %3 = vector.load %arg2[%c0, %c0_1] : memref<16x128xf32, #tpu.memory_space<vmem>>, vector<16x128xf32>
    %c0_2 = arith.constant 0 : index
    %c0_3 = arith.constant 0 : index
    %4 = vector.load %arg3[%c0_2, %c0_3] : memref<16x128xi8, #tpu.memory_space<vmem>>, vector<16x128xi8>
    %5 = arith.sitofp %4 : vector<16x128xi8> to vector<16x128xf32>
    %cst = arith.constant 0.000000e+00 : f32
    %6 = vector.broadcast %cst : f32 to vector<16x128xf32>
    %7 = arith.subf %6, %3 : vector<16x128xf32>
    %8 = math.exp %7 : vector<16x128xf32>
    %cst_4 = arith.constant 1.000000e+00 : f32
    %9 = vector.broadcast %cst_4 : f32 to vector<16x128xf32>
    %10 = arith.addf %9, %8 : vector<16x128xf32>
    %11 = tpu.reciprocal %10 : vector<16x128xf32> -> vector<16x128xf32>
    %cst_5 = arith.constant 1.000000e+00 : f32
    %12 = vector.broadcast %cst_5 : f32 to vector<16x128xf32>
    %13 = arith.subf %12, %11 : vector<16x128xf32>
    %cst_6 = arith.constant 5.000000e-02 : f32
    %14 = vector.broadcast %cst_6 : f32 to vector<16x128xf32>
    %15 = arith.addf %13, %14 : vector<16x128xf32>
    %cst_7 = arith.constant 1.000000e+00 : f32
    %16 = vector.broadcast %cst_7 : f32 to vector<16x128xf32>
    %17 = arith.minimumf %15, %16 : vector<16x128xf32>
    %cst_8 = arith.constant 5.000000e-01 : f32
    %18 = vector.broadcast %cst_8 : f32 to vector<16x128xf32>
    %19 = arith.cmpf ogt, %5, %18 : vector<16x128xf32>
    %20 = arith.select %19, %11, %17 : vector<16x128xi1>, vector<16x128xf32>
    %cst_9 = arith.constant 9.99999993E-9 : f32
    %21 = vector.broadcast %cst_9 : f32 to vector<16x128xf32>
    %22 = arith.maximumf %20, %21 : vector<16x128xf32>
    %23 = math.log %22 : vector<16x128xf32>
    %cst_10 = arith.constant 1.000000e+00 : f32
    %24 = vector.broadcast %cst_10 : f32 to vector<16x128xf32>
    %25 = arith.subf %24, %20 : vector<16x128xf32>
    %26 = arith.mulf %25, %25 : vector<16x128xf32>
    %27 = arith.mulf %26, %26 : vector<16x128xf32>
    %28 = arith.select %19, %25, %27 : vector<16x128xi1>, vector<16x128xf32>
    %29 = arith.mulf %23, %28 : vector<16x128xf32>
    %c1_i32 = arith.constant 1 : i32
    %30 = arith.muli %arg0, %c1_i32 : i32
    %31 = arith.addi %30, %arg1 : i32
    %c16_i32 = arith.constant 16 : i32
    %32 = arith.muli %31, %c16_i32 : i32
    %33 = tpu.iota {dimensions = array<i32: 0>} : vector<16x128xi32>
    %34 = vector.broadcast %32 : i32 to vector<16x128xi32>
    %35 = arith.addi %33, %34 : vector<16x128xi32>
    %36 = tpu.iota {dimensions = array<i32: 1>} : vector<16x128xi32>
    %c10_i32 = arith.constant 10 : i32
    %37 = vector.broadcast %c10_i32 : i32 to vector<16x128xi32>
    %38 = arith.cmpi slt, %35, %37 : vector<16x128xi32>
    %c80_i32 = arith.constant 80 : i32
    %39 = vector.broadcast %c80_i32 : i32 to vector<16x128xi32>
    %40 = arith.cmpi slt, %36, %39 : vector<16x128xi32>
    %41 = arith.andi %38, %40 : vector<16x128xi1>
    %cst_11 = arith.constant 0.000000e+00 : f32
    %42 = vector.broadcast %cst_11 : f32 to vector<16x128xf32>
    %43 = arith.select %41, %29, %42 : vector<16x128xi1>, vector<16x128xf32>
    %c0_12 = arith.constant 0 : index
    %c0_13 = arith.constant 0 : index
    %44 = vector.load %arg5[%c0_12, %c0_13] : memref<1x128xf32, #tpu.memory_space<vmem>>, vector<1x128xf32>
    %cst_14 = arith.constant dense<0.000000e+00> : vector<128xf32>
    %45 = vector.multi_reduction <add>, %43, %cst_14 [0] : vector<16x128xf32> to vector<128xf32>
    %46 = vector.shape_cast %45 : vector<128xf32> to vector<1x128xf32>
    %47 = arith.addf %44, %46 : vector<1x128xf32>
    %c0_15 = arith.constant 0 : index
    %c0_16 = arith.constant 0 : index
    %48 = vector.load %arg5[%c0_15, %c0_16] : memref<1x128xf32, #tpu.memory_space<vmem>>, vector<1x128xf32>
    tpu.vector_store %arg5[%c0_15, %c0_16], %47 {strides = array<i32>} : memref<1x128xf32, #tpu.memory_space<vmem>>, vector<1x128xf32>,
    %c0_i32_17 = arith.constant 0 : i32
    %49 = arith.cmpi eq, %arg1, %c0_i32_17 : i32
    %50 = arith.extui %49 : i1 to i32
    %c0_i32_18 = arith.constant 0 : i32
    %51 = arith.cmpi ne, %50, %c0_i32_18 : i32
    scf.if %51 {
      %c0_19 = arith.constant 0 : index
      %c0_20 = arith.constant 0 : index
      %52 = vector.load %arg5[%c0_19, %c0_20] : memref<1x128xf32, #tpu.memory_space<vmem>>, vector<1x128xf32>
      %53 = vector.shape_cast %52 : vector<1x128xf32> to vector<1x1x128xf32>
      %cst_21 = arith.constant dense<0.000000e+00> : vector<1xf32>
      %54 = vector.multi_reduction <add>, %53, %cst_21 [1, 2] : vector<1x1x128xf32> to vector<1xf32>
      %55 = vector.shape_cast %54 : vector<1xf32> to vector<1x1x1xf32>
      %56 = vector.extract %55[0, 0, 0] : f32 from vector<1x1x1xf32>
      %57 = vector.broadcast %56 : f32 to vector<8x128xf32>
      %c0_22 = arith.constant 0 : index
      %c0_23 = arith.constant 0 : index
      %58 = vector.load %arg4[%c0_22, %c0_23] : memref<8x128xf32, #tpu.memory_space<vmem>>, vector<8x128xf32>
      tpu.vector_store %arg4[%c0_22, %c0_23], %57 {strides = array<i32>} : memref<8x128xf32, #tpu.memory_space<vmem>>, vector<8x128xf32>,
    } else {
    }
    return
  }
  func.func @transform_0(%arg0: i32, %arg1: i32) -> (i32, i32) {
    %c1_i32 = arith.constant 1 : i32
    %0 = arith.muli %arg0, %c1_i32 : i32
    %1 = arith.addi %0, %arg1 : i32
    %c0_i32 = arith.constant 0 : i32
    %c0_i32_0 = arith.constant 0 : i32
    return %1, %c0_i32 : i32, i32
  }
  func.func @transform_1(%arg0: i32, %arg1: i32) -> (i32, i32) {
    %c1_i32 = arith.constant 1 : i32
    %0 = arith.muli %arg0, %c1_i32 : i32
    %1 = arith.addi %0, %arg1 : i32
    %c0_i32 = arith.constant 0 : i32
    %c0_i32_0 = arith.constant 0 : i32
    return %1, %c0_i32 : i32, i32
  }
  func.func @transform_2(%arg0: i32, %arg1: i32) -> (i32, i32) {
    %c0_i32 = arith.constant 0 : i32
    %c0_i32_0 = arith.constant 0 : i32
    return %arg0, %c0_i32 : i32, i32
  }
}

</mosaic_0001>

<llo_original>
// kernel: tpu_custom_call.1
$region0: #{tpu_custom_call.1}
  #allocation0 [shape = 'u32[]', space=smem, size = 0x4, offset = 0x4, fixed_abs, tag = 'smem constant byte address 0x4 - core index']
  #allocation1 [shape = 'u32[72,128]{1,0:T(1,128)}', space=vmem, size = 0x9000, scoped, tag = 'internal scratch']
  #allocation2 [shape = 'f32[1,128]{1,0:T(1,128)}', space=vmem, size = 0x200, scoped, tag = 'scratch operand']
  %s0 = inlined_call_operand.hbm [shape: f32[16,128], index: 0, kind: input, shape index: {}]
  %s1 = inlined_call_operand.hbm [shape: s8[16,128], index: 1, kind: input, shape index: {}]
  %s2 = inlined_call_operand.hbm [shape: f32[8,128], index: 2, kind: output, shape index: {}]
  %s3 = sld [smem:[#allocation0]]
  $region34: #{tpu_custom_call.1} parent=0
    _
  %s5 = ssub.s32 1, %s3
  %s6 = scalar_select 0, %s5, %s3
  $region1: #{tpu_custom_call.1} parent=0
    #allocation3 [shape = 'u8[8192]{0}', space=vmem, size = 0x2000, scoped, tag = 'input window, operand 0, single buffered']
    #allocation4 [shape = 's32[1]{0}', space=sflag, size = 0x4, scoped, tag = 'scoped memory for tpu_custom_call.1']
    #allocation5 [shape = 's32[1]{0}', space=sflag, size = 0x4, scoped, tag = 'scoped memory for tpu_custom_call.1']
    #allocation6 [shape = 'u8[2048]{0}', space=vmem, size = 0x800, scoped, tag = 'input window, operand 1, single buffered']
    #allocation7 [shape = 's32[1]{0}', space=sflag, size = 0x4, scoped, tag = 'scoped memory for tpu_custom_call.1']
    #allocation8 [shape = 'u8[4096]{0}', space=vmem, size = 0x1000, scoped, tag = 'output window, operand 0, single buffered']
    %7 = vsyncpa [#allocation4], 0
    %8 = vsyncpa [#allocation7], 0
    %9 = vsyncpa [#allocation5], 0
    // Predicated region
    $region2: #{tpu_custom_call.1} parent=1 // pred_check
      _
    $region3: #{tpu_custom_call.1} parent=1 // pred_check_branch
      %11 = sbr.rel (0) target = $region5
    $region4: #{tpu_custom_call.1} parent=1 // pred_region
      %s12 = sadd.s32 0, 0
      %s13 = smul.u32 2, %s12
      %15 = vsyncadd [#allocation4], 0
      %s16 = smul.addr %s13, 8
      %s17 = scalar_lea.hbm %s0, %s16
      %s18 = sshll.u32 %s17, 4
      %s19 = int_to_ptr.hbm [resolvable:$true] %s18
      %s20 = sshll.u32 [#allocation3], 4
      %s21 = int_to_ptr.vmem [resolvable:$true] %s20
      %26 = dma.hbm_to_vmem [thread:$0]  %s19, 256, %s21, [#allocation4], 128, 128, 8
    $region5: #{tpu_custom_call.1} parent=1 // pred_fallthru
      _
    // Predicated region
    $region6: #{tpu_custom_call.1} parent=1 // pred_check
      _
    $region7: #{tpu_custom_call.1} parent=1 // pred_check_branch
      %28 = sbr.rel (0) target = $region9
    $region8: #{tpu_custom_call.1} parent=1 // pred_region
      %s29 = sadd.s32 0, 0
      %s30 = smul.u32 2, %s29
      %32 = vsyncadd [#allocation7], 0
      %s33 = smul.addr %s30, 2
      %s34 = scalar_lea.hbm %s1, %s33
      %s35 = sshll.u32 %s34, 4
      %s36 = int_to_ptr.hbm [resolvable:$true] %s35
      %s37 = sshll.u32 [#allocation6], 4
      %s38 = int_to_ptr.vmem [resolvable:$true] %s37
      %43 = dma.hbm_to_vmem [thread:$0]  %s36, 64, %s38, [#allocation7], 32, 32, 2
    $region9: #{tpu_custom_call.1} parent=1 // pred_fallthru
      _
    // Predicated region
    $region10: #{tpu_custom_call.1} parent=1 // pred_check
      _
    $region11: #{tpu_custom_call.1} parent=1 // pred_check_branch
      %45 = sbr.rel (0) target = $region13
    $region12: #{tpu_custom_call.1} parent=1 // pred_region
      %47 = dma.done [#allocation4], 256
    $region13: #{tpu_custom_call.1} parent=1 // pred_fallthru
      _
    // Predicated region
    $region14: #{tpu_custom_call.1} parent=1 // pred_check
      _
    $region15: #{tpu_custom_call.1} parent=1 // pred_check_branch
      %49 = sbr.rel (0) target = $region17
    $region16: #{tpu_custom_call.1} parent=1 // pred_region
      %51 = dma.done [#allocation7], 64
    $region17: #{tpu_custom_call.1} parent=1 // pred_fallthru
      _
    %s52 = sadd.s32 0, 0
    %s53 = smul.u32 2, %s52
    %s54 = sadd.s32 0, 0
    %s55 = smul.u32 2, %s54
    %p56 = scmp.eq.s32.totalorder 0, 0
    // Predicated region
    $region18: #{tpu_custom_call.1} parent=1 // pred_check
      %p57 = pneg %p56
    $region19: #{tpu_custom_call.1} parent=1 // pred_check_branch
      %59 = sbr.rel (%p57) target = $region21
    $region20: #{tpu_custom_call.1} parent=1 // pred_region
      %60 = vst [vmem:[#allocation2] sm:$0x1] 0.0
    $region21: #{tpu_custom_call.1} parent=1 // pred_fallthru
      _
    %v61 = vld [vmem:[#allocation3] sm:$0xff]
    %v62 = vld [vmem:[#allocation3 + $0x8] sm:$0xff]
    %v63 = vld [vmem:[#allocation6] sm:$0x3]
    %v64 = vld [vmem:[#allocation6 + $0x2] sm:$0x3]
    %v65 = vunpack.c.0.s8 %v63
    %v66 = vunpack.c.0.s8 %v64
    %v67 = vcvt.s32.f32 %v65
    %v68 = vcvt.s32.f32 %v66
    %v69 = vsub.f32 0.0, %v61
    %v70 = vsub.f32 0.0, %v62
    %v71 = vmul.f32 %v69, 1.442695
    %v72 = vpow.pop %v71
    %v73 = vmul.f32 %v70, 1.442695
    %v74 = vpow.pop %v73
    %v75 = vadd.f32 %v72, 1.0
    %v76 = vadd.f32 %v74, 1.0
    %v77 = vrcp.pop %v75
    %v78 = vmul.f32 %v75, %v77
    %v79 = vsub.f32 1.0, %v78
    %v80 = vmul.f32 %v77, %v79
    %v81 = vadd.f32 %v77, %v80
    %vm82 = vweird.f32 %v75
    %vm83 = vweird.f32 %v77
    %vm84 = vmor %vm82, %vm83
    %v85 = vsel %vm84, %v77, %v81
    %v86 = vand.u32 2147483647, %v75
    %vm87 = vcmp.eq.f32.partialorder %v86, 8.507059e+37
    %v88 = vand.u32 %v75, 2147483648
    %v89 = vor.u32 1.1754944e-38, %v88
    %v90 = vsel %vm87, %v89, %v85
    %v91 = vrcp.pop %v76
    %v92 = vmul.f32 %v76, %v91
    %v93 = vsub.f32 1.0, %v92
    %v94 = vmul.f32 %v91, %v93
    %v95 = vadd.f32 %v91, %v94
    %vm96 = vweird.f32 %v76
    %vm97 = vweird.f32 %v91
    %vm98 = vmor %vm96, %vm97
    %v99 = vsel %vm98, %v91, %v95
    %v100 = vand.u32 2147483647, %v76
    %vm101 = vcmp.eq.f32.partialorder %v100, 8.507059e+37
    %v102 = vand.u32 %v76, 2147483648
    %v103 = vor.u32 1.1754944e-38, %v102
    %v104 = vsel %vm101, %v103, %v99
    %v105 = vsub.f32 1.0, %v90
    %v106 = vsub.f32 1.0, %v104
    %v107 = vadd.f32 %v105, 0.05
    %v108 = vadd.f32 %v106, 0.05
    %v109 = vmin.f32 %v107, 1.0
    %v110 = vmin.f32 %v108, 1.0
    %vm111 = vcmp.gt.f32.partialorder %v67, 0.5
    %vm112 = vcmp.gt.f32.partialorder %v68, 0.5
    %v113 = vsel %vm111, %v90, %v109
    %v114 = vsel %vm112, %v104, %v110
    %v115 = vmax.f32 %v113, 1e-08
    %v116 = vmax.f32 %v114, 1e-08
    %v117 = vlog2.pop %v115
    %v118 = vmul.f32 %v117, 0.6931472
    %v119 = vlog2.pop %v116
    %v120 = vmul.f32 %v119, 0.6931472
    %v121 = vsub.f32 1.0, %v113
    %v122 = vsub.f32 1.0, %v114
    %v123 = vmul.f32 %v121, %v121
    %v124 = vmul.f32 %v122, %v122
    %v125 = vmul.f32 %v123, %v123
    %v126 = vmul.f32 %v124, %v124
    %v127 = vsel %vm111, %v121, %v125
    %v128 = vsel %vm112, %v122, %v126
    %v129 = vmul.f32 %v118, %v127
    %v130 = vmul.f32 %v120, %v128
    %s131 = sadd.s32 0, 0
    %s132 = smul.u32 %s131, 16
    %v133 = vlaneseq
    %v134 = vshrl.u32 %v133, 7
    %v135 = vadd.s32 %v134, 8
    %v136 = vstv %s132
    %v137 = vadd.s32 %v134, %v136
    %v138 = vadd.s32 %v135, %v136
    %v139 = vlaneseq
    %v140 = vand.u32 %v139, 127
    %vm141 = vcmp.lt.s32.totalorder %v137, 10
    %vm142 = vcmp.lt.s32.totalorder %v138, 10
    %vm143 = vcmp.lt.s32.totalorder %v140, 80
    %vm144 = vmand %vm141, %vm143
    %vm145 = vmand %vm142, %vm143
    %v146 = vsel %vm144, %v129, 0.0
    %v147 = vsel %vm145, %v130, 0.0
    %v148 = vld [vmem:[#allocation2] sm:$0x1]
    %v149 = vadd.f32 %v146, %v147
    %v150 = vrot.slane %v149, 4
    %v151 = vadd.f32 %v149, %v150
    %v152 = vrot.slane %v151, 2
    %v153 = vadd.f32 %v151, %v152
    %v154 = vrot.slane %v153, 1
    %v155 = vadd.f32 %v153, %v154
    %v156 = vadd.f32 %v148, %v155
    %157 = vst [vmem:[#allocation2] sm:$0x1] %v156
    // Predicated region
    $region22: #{tpu_custom_call.1} parent=1 // pred_check
      %p158 = pneg %p56
    $region23: #{tpu_custom_call.1} parent=1 // pred_check_branch
      %160 = sbr.rel (%p158) target = $region25
    $region24: #{tpu_custom_call.1} parent=1 // pred_region
      %v161 = vld [vmem:[#allocation2] sm:$0x1]
      %vm162 = vcmask 1040384
      %v163 = vsel %vm162, %v161, 0.0
      %164 = vadd.xlane.f32.xlu0 %v163
      %v165 = vpop.xlane.xlu0 %164
      %v166 = vrot.slane %v165, 4
      %v167 = vadd.f32 %v165, %v166
      %v168 = vrot.slane %v167, 2
      %v169 = vadd.f32 %v167, %v168
      %v170 = vrot.slane %v169, 1
      %v171 = vadd.f32 %v169, %v170
      %s172 = vtos %v171
      %v173 = vstv %s172
      %174 = vst [vmem:[#allocation8] sm:$0xff] %v173
    $region25: #{tpu_custom_call.1} parent=1 // pred_fallthru
      _
    // Predicated region
    $region26: #{tpu_custom_call.1} parent=1 // pred_check
      _
    $region27: #{tpu_custom_call.1} parent=1 // pred_check_branch
      %176 = sbr.rel (0) target = $region29
    $region28: #{tpu_custom_call.1} parent=1 // pred_region
      %178 = vsyncadd [#allocation5], 0
      %s180 = sshll.u32 [#allocation8], 4
      %s181 = int_to_ptr.vmem [resolvable:$true] %s180
      %s182 = sshll.u32 %s2, 4
      %s183 = int_to_ptr.hbm [resolvable:$true] %s182
      %185 = dma.vmem_to_hbm [thread:$0]  %s181, 128, %s183, [#allocation5]
    $region29: #{tpu_custom_call.1} parent=1 // pred_fallthru
      _
    // Predicated region
    $region30: #{tpu_custom_call.1} parent=1 // pred_check
      _
    $region31: #{tpu_custom_call.1} parent=1 // pred_check_branch
      %187 = sbr.rel (0) target = $region33
    $region32: #{tpu_custom_call.1} parent=1 // pred_region
      %189 = dma.done [#allocation5], 128
    $region33: #{tpu_custom_call.1} parent=1 // pred_fallthru
      _
    %190 = vsyncpa [#allocation4], 1
    %191 = vsyncpa [#allocation7], 1
    %192 = vsyncpa [#allocation5], 1

</llo_original>
